<compile_context>
chip_gen: v5e
topology: v5e:2x2
jax: 0.10.0
libtpu: 0.0.40
codegen_flags: <defaults>
</compile_context>

<pallas_src>
import jax
import jax.numpy as jnp
import numpy as np
from jax.experimental import pallas as pl
from jax.experimental.pallas import tpu as pltpu


def _gat_kernel(negative_slope, heads, f_out):
    """Single invocation: whole (small) graph + all heads resident in VMEM."""
    hf = heads * f_out

    def kernel(x_ref, w_ref, esrc_ref, mask_ref, o_ref):
        x = x_ref[...]                                  # [N, F_in]   f32
        w = w_ref[...]                                  # [F_in, H*F_out + H]
        e_src = esrc_ref[...]                           # [H, N]      f32
        bias = mask_ref[...].astype(jnp.float32)        # [N, N] additive mask

        # One lane-dense MXU matmul: per-head features + per-target scores.
        # (Keep operands f32 here; these test shapes are nowhere near
        #  MXU-bound and bf16 casts would only loosen accuracy.)
        y = jnp.dot(x, w, preferred_element_type=jnp.float32)  # [N, H*F_out+H]
        h_all = y[:, :hf]                               # [N, H*F_out]
        e_dst = y[:, hf:]                               # [N, H]

        outs = []
        for h in range(heads):
            # e[i, j] = h_i . a_dst[h]  +  h_j . a_src[h]   (target i, source j)
            e = e_dst[:, h:h + 1] + e_src[h:h + 1, :]           # [N, N]
            e = jnp.where(e > 0, e, negative_slope * e)         # LeakyReLU
            e = e + bias                                        # mask: + -1e30
            e_max = jnp.max(e, axis=-1, keepdims=True)
            p = jnp.exp(e - e_max)                              # masked -> 0
            denom = jnp.sum(p, axis=-1, keepdims=True)          # > 0 (self-loop)
            h_h = h_all[:, h * f_out:(h + 1) * f_out]           # [N, F_out]
            out_h = jnp.dot(p, h_h, preferred_element_type=jnp.float32)
            # Scale the small [N, F_out] output instead of [N, N] probs.
            out_h = out_h * pl.reciprocal(denom, approx=True)
            outs.append(out_h)

        # Single lane-dense store: [N, H*F_out].
        o_ref[...] = jnp.concatenate(outs, axis=-1).astype(o_ref.dtype)

    return kernel


def gat_forward(x, edge_index, weight, att_weight, bias,
                *, concat=True, negative_slope=0.2):
    N, f_in = x.shape
    _, heads, f_out = weight.shape
    hf = heads * f_out

    # Glue: densify edge list -> additive softmax mask (self-loops added).
    # edge_index[0] = row (target i), edge_index[1] = col (source j).
    row, col = edge_index[0], edge_index[1]
    adj = jnp.zeros((N, N), jnp.float32).at[row, col].set(1.0)
    adj = jnp.maximum(adj, jnp.eye(N, dtype=jnp.float32))
    mask_bias = jnp.where(adj > 0, 0.0, -1e30).astype(jnp.bfloat16)   # [N, N]

    # Fold the per-target attention vector into the weight matrix columns.
    a_dst = att_weight[:, :f_out]                               # [H, F_out]
    a_src = att_weight[:, f_out:]                               # [H, F_out]
    w_all = weight.reshape(f_in, hf)                            # [F_in, H*F_out]
    u_dst = jnp.einsum('fho,ho->fh', weight, a_dst)             # [F_in, H]
    w_aug = jnp.concatenate([w_all, u_dst], axis=1)             # [F_in, H*F_out+H]

    # Tiny lane-dense per-source score rows [H, N] (computed in glue to avoid
    # an in-kernel sublane->lane relayout).
    u_src = jnp.einsum('fho,ho->fh', weight, a_src)             # [F_in, H]
    e_src_rows = jnp.dot(x, u_src).T                            # [H, N]

    out = pl.pallas_call(
        _gat_kernel(negative_slope, heads, f_out),
        out_shape=jax.ShapeDtypeStruct((N, hf), jnp.float32),
        grid_spec=pltpu.PrefetchScalarGridSpec(
            num_scalar_prefetch=0,
            grid=(1,),
            in_specs=[
                pl.BlockSpec((N, f_in), lambda i: (0, 0)),          # x
                pl.BlockSpec((f_in, hf + heads), lambda i: (0, 0)), # W_aug
                pl.BlockSpec((heads, N), lambda i: (0, 0)),         # e_src rows
                pl.BlockSpec((N, N), lambda i: (0, 0)),             # mask bias
            ],
            out_specs=pl.BlockSpec((N, hf), lambda i: (0, 0)),
        ),
        compiler_params=pltpu.CompilerParams(
            dimension_semantics=("arbitrary",)),
    )(x, w_aug, e_src_rows, mask_bias)

    if concat:
        if bias is not None:
            out = out + bias
    else:
        out = jnp.mean(out.reshape(N, heads, f_out), axis=1)
        if bias is not None:
            out = out + bias
    return out


def gat_reference(x, edge_index, weight, att_weight, bias,
                  *, concat=True, negative_slope=0.2):
    """Pure-JAX dense reference with identical semantics (for verification)."""
    N, f_in = x.shape
    _, heads, f_out = weight.shape
    row, col = edge_index[0], edge_index[1]
    adj = jnp.zeros((N, N), jnp.float32).at[row, col].set(1.0)
    adj = jnp.maximum(adj, jnp.eye(N, dtype=jnp.float32))

    h = jnp.einsum('nf,fho->nho', x, weight)                 # [N, H, F_out]
    a_dst = att_weight[:, :f_out]                            # [H, F_out]
    a_src = att_weight[:, f_out:]                            # [H, F_out]
    e = (jnp.einsum('nho,ho->nh', h, a_dst)[:, None, :]      # target i
         + jnp.einsum('nho,ho->nh', h, a_src)[None, :, :])   # source j  -> [N, N, H]
    e = jnp.where(e > 0, e, negative_slope * e)
    mask = (adj > 0)[:, :, None]
    e = jnp.where(mask, e, -1e30)
    e = e - jnp.max(e, axis=1, keepdims=True)
    p = jnp.where(mask, jnp.exp(e), 0.0)
    alpha = p / jnp.sum(p, axis=1, keepdims=True)            # [N, N, H]
    out = jnp.einsum('njh,jho->nho', alpha, h)               # [N, H, F_out]
    if concat:
        out = out.reshape(N, heads * f_out)
    else:
        out = jnp.mean(out, axis=1)
    if bias is not None:
        out = out + bias
    return out


if __name__ == "__main__":
    N, F_IN, F_OUT, HEADS = 16, 8, 8, 4
    CONCAT = True

    key = jax.random.PRNGKey(0)
    k1, k2, k3, k4, k5 = jax.random.split(key, 5)

    # reset_parameters(): uniform(-1/sqrt(heads*in_features), +1/sqrt(heads*in_features))
    size = HEADS * F_IN
    bound = 1.0 / np.sqrt(size)
    weight = jax.random.uniform(k1, (F_IN, HEADS, F_OUT), jnp.float32, -bound, bound)
    att_weight = jax.random.uniform(k2, (HEADS, 2 * F_OUT), jnp.float32, -bound, bound)
    bias_dim = F_OUT * HEADS if CONCAT else F_OUT
    bias = jax.random.uniform(k3, (bias_dim,), jnp.float32, -bound, bound)

    # Inputs: node features + a small deterministic edge list (ring + extras).
    x = jax.random.normal(k4, (N, F_IN), jnp.float32)
    src = jnp.arange(N)
    dst = (src + 1) % N
    extra_src = jax.random.randint(k5, (16,), 0, N)
    extra_dst = (extra_src * 3 + 5) % N
    # edge_index[0] = row (target), edge_index[1] = col (source)
    edge_index = jnp.stack([jnp.concatenate([dst, extra_dst]),
                            jnp.concatenate([src, extra_src])]).astype(jnp.int32)

    out = gat_forward(x, edge_index, weight, att_weight, bias,
                      concat=CONCAT, negative_slope=0.2)
    out = jax.block_until_ready(out)

    ref = gat_reference(x, edge_index, weight, att_weight, bias,
                        concat=CONCAT, negative_slope=0.2)
    ref = jax.block_until_ready(ref)

    assert out.shape == (N, HEADS * F_OUT if CONCAT else F_OUT)
    # Tolerance slightly relaxed vs 1e-4: approx EUP reciprocal + bf16 mask bias.
    assert np.allclose(np.asarray(out), np.asarray(ref), atol=2e-3, rtol=2e-3)
    print("KERNEL_OK")
</pallas_src>

<mosaic_0001>
module attributes {stable_mosaic.version = 11 : i64} {
  func.func @kernel(%arg0: i32, %arg1: memref<16x8xf32, #tpu.memory_space<vmem>>, %arg2: memref<8x36xf32, #tpu.memory_space<vmem>>, %arg3: memref<4x16xf32, #tpu.memory_space<vmem>>, %arg4: memref<16x16xbf16, #tpu.memory_space<vmem>>, %arg5: memref<16x32xf32, #tpu.memory_space<vmem>>) attributes {dimension_semantics = [#tpu.dimension_semantics<arbitrary>], iteration_bounds = array<i64: 1>, scalar_prefetch = 0 : i64, scratch_operands = 0 : i64, tpu.core_type = #tpu.core_type<tc>, window_params = [{pipeline_mode = #tpu.pipeline_mode<synchronous>, transform_indices = @transform_0, window_bounds = array<i64: 16, 8>}, {pipeline_mode = #tpu.pipeline_mode<synchronous>, transform_indices = @transform_1, window_bounds = array<i64: 8, 36>}, {pipeline_mode = #tpu.pipeline_mode<synchronous>, transform_indices = @transform_2, window_bounds = array<i64: 4, 16>}, {pipeline_mode = #tpu.pipeline_mode<synchronous>, transform_indices = @transform_3, window_bounds = array<i64: 16, 16>}, {pipeline_mode = #tpu.pipeline_mode<synchronous>, transform_indices = @transform_4, window_bounds = array<i64: 16, 32>}]} {
    %c0 = arith.constant 0 : index
    %c0_0 = arith.constant 0 : index
    %0 = vector.load %arg1[%c0, %c0_0] : memref<16x8xf32, #tpu.memory_space<vmem>>, vector<16x8xf32>
    %c0_1 = arith.constant 0 : index
    %c0_2 = arith.constant 0 : index
    %1 = vector.load %arg2[%c0_1, %c0_2] : memref<8x36xf32, #tpu.memory_space<vmem>>, vector<8x36xf32>
    %c0_3 = arith.constant 0 : index
    %c0_4 = arith.constant 0 : index
    %2 = vector.load %arg3[%c0_3, %c0_4] : memref<4x16xf32, #tpu.memory_space<vmem>>, vector<4x16xf32>
    %c0_5 = arith.constant 0 : index
    %c0_6 = arith.constant 0 : index
    %3 = vector.load %arg4[%c0_5, %c0_6] : memref<16x16xbf16, #tpu.memory_space<vmem>>, vector<16x16xbf16>
    %4 = arith.extf %3 : vector<16x16xbf16> to vector<16x16xf32>
    %cst = arith.constant dense<0.000000e+00> : vector<16x36xf32>
    %5 = tpu.matmul %0, %1, %cst {dimension_numbers = #tpu.dot_dimension_numbers<[1], [0], [0], [1], [0, 0, 1, 1], [], []>} : vector<16x8xf32>, vector<8x36xf32>, vector<16x36xf32> -> vector<16x36xf32>
    %6 = vector.extract_strided_slice %5 {offsets = [0, 0], sizes = [16, 32], strides = [1, 1]} : vector<16x36xf32> to vector<16x32xf32>
    %7 = vector.extract_strided_slice %5 {offsets = [0, 32], sizes = [16, 4], strides = [1, 1]} : vector<16x36xf32> to vector<16x4xf32>
    %8 = vector.extract_strided_slice %7 {offsets = [0, 0], sizes = [16, 1], strides = [1, 1]} : vector<16x4xf32> to vector<16x1xf32>
    %9 = vector.extract_strided_slice %2 {offsets = [0, 0], sizes = [1, 16], strides = [1, 1]} : vector<4x16xf32> to vector<1x16xf32>
    %10 = vector.broadcast %8 : vector<16x1xf32> to vector<16x16xf32>
    %11 = vector.broadcast %9 : vector<1x16xf32> to vector<16x16xf32>
    %12 = arith.addf %10, %11 : vector<16x16xf32>
    %cst_7 = arith.constant 0.000000e+00 : f32
    %13 = vector.broadcast %cst_7 : f32 to vector<16x16xf32>
    %14 = arith.cmpf ogt, %12, %13 : vector<16x16xf32>
    %cst_8 = arith.constant 2.000000e-01 : f32
    %15 = vector.broadcast %cst_8 : f32 to vector<16x16xf32>
    %16 = arith.mulf %15, %12 : vector<16x16xf32>
    %17 = arith.select %14, %12, %16 : vector<16x16xi1>, vector<16x16xf32>
    %18 = arith.addf %17, %4 : vector<16x16xf32>
    %cst_9 = arith.constant dense<0xFF800000> : vector<16xf32>
    %19 = vector.multi_reduction <maximumf>, %18, %cst_9 [1] : vector<16x16xf32> to vector<16xf32>
    %20 = vector.shape_cast %19 : vector<16xf32> to vector<16x1xf32>
    %21 = vector.broadcast %20 : vector<16x1xf32> to vector<16x16xf32>
    %22 = arith.subf %18, %21 : vector<16x16xf32>
    %23 = math.exp %22 : vector<16x16xf32>
    %cst_10 = arith.constant dense<0.000000e+00> : vector<16xf32>
    %24 = vector.multi_reduction <add>, %23, %cst_10 [1] : vector<16x16xf32> to vector<16xf32>
    %25 = vector.shape_cast %24 : vector<16xf32> to vector<16x1xf32>
    %26 = vector.extract_strided_slice %6 {offsets = [0, 0], sizes = [16, 8], strides = [1, 1]} : vector<16x32xf32> to vector<16x8xf32>
    %cst_11 = arith.constant dense<0.000000e+00> : vector<16x8xf32>
    %27 = tpu.matmul %23, %26, %cst_11 {dimension_numbers = #tpu.dot_dimension_numbers<[1], [0], [0], [1], [0, 0, 1, 1], [], []>} : vector<16x16xf32>, vector<16x8xf32>, vector<16x8xf32> -> vector<16x8xf32>
    %28 = tpu.reciprocal %25 {approx = true} : vector<16x1xf32> -> vector<16x1xf32>
    %29 = vector.broadcast %28 : vector<16x1xf32> to vector<16x8xf32>
    %30 = arith.mulf %27, %29 : vector<16x8xf32>
    %31 = vector.extract_strided_slice %7 {offsets = [0, 1], sizes = [16, 1], strides = [1, 1]} : vector<16x4xf32> to vector<16x1xf32>
    %32 = vector.extract_strided_slice %2 {offsets = [1, 0], sizes = [1, 16], strides = [1, 1]} : vector<4x16xf32> to vector<1x16xf32>
    %33 = vector.broadcast %31 : vector<16x1xf32> to vector<16x16xf32>
    %34 = vector.broadcast %32 : vector<1x16xf32> to vector<16x16xf32>
    %35 = arith.addf %33, %34 : vector<16x16xf32>
    %cst_12 = arith.constant 0.000000e+00 : f32
    %36 = vector.broadcast %cst_12 : f32 to vector<16x16xf32>
    %37 = arith.cmpf ogt, %35, %36 : vector<16x16xf32>
    %cst_13 = arith.constant 2.000000e-01 : f32
    %38 = vector.broadcast %cst_13 : f32 to vector<16x16xf32>
    %39 = arith.mulf %38, %35 : vector<16x16xf32>
    %40 = arith.select %37, %35, %39 : vector<16x16xi1>, vector<16x16xf32>
    %41 = arith.addf %40, %4 : vector<16x16xf32>
    %cst_14 = arith.constant dense<0xFF800000> : vector<16xf32>
    %42 = vector.multi_reduction <maximumf>, %41, %cst_14 [1] : vector<16x16xf32> to vector<16xf32>
    %43 = vector.shape_cast %42 : vector<16xf32> to vector<16x1xf32>
    %44 = vector.broadcast %43 : vector<16x1xf32> to vector<16x16xf32>
    %45 = arith.subf %41, %44 : vector<16x16xf32>
    %46 = math.exp %45 : vector<16x16xf32>
    %cst_15 = arith.constant dense<0.000000e+00> : vector<16xf32>
    %47 = vector.multi_reduction <add>, %46, %cst_15 [1] : vector<16x16xf32> to vector<16xf32>
    %48 = vector.shape_cast %47 : vector<16xf32> to vector<16x1xf32>
    %49 = vector.extract_strided_slice %6 {offsets = [0, 8], sizes = [16, 8], strides = [1, 1]} : vector<16x32xf32> to vector<16x8xf32>
    %cst_16 = arith.constant dense<0.000000e+00> : vector<16x8xf32>
    %50 = tpu.matmul %46, %49, %cst_16 {dimension_numbers = #tpu.dot_dimension_numbers<[1], [0], [0], [1], [0, 0, 1, 1], [], []>} : vector<16x16xf32>, vector<16x8xf32>, vector<16x8xf32> -> vector<16x8xf32>
    %51 = tpu.reciprocal %48 {approx = true} : vector<16x1xf32> -> vector<16x1xf32>
    %52 = vector.broadcast %51 : vector<16x1xf32> to vector<16x8xf32>
    %53 = arith.mulf %50, %52 : vector<16x8xf32>
    %54 = vector.extract_strided_slice %7 {offsets = [0, 2], sizes = [16, 1], strides = [1, 1]} : vector<16x4xf32> to vector<16x1xf32>
    %55 = vector.extract_strided_slice %2 {offsets = [2, 0], sizes = [1, 16], strides = [1, 1]} : vector<4x16xf32> to vector<1x16xf32>
    %56 = vector.broadcast %54 : vector<16x1xf32> to vector<16x16xf32>
    %57 = vector.broadcast %55 : vector<1x16xf32> to vector<16x16xf32>
    %58 = arith.addf %56, %57 : vector<16x16xf32>
    %cst_17 = arith.constant 0.000000e+00 : f32
    %59 = vector.broadcast %cst_17 : f32 to vector<16x16xf32>
    %60 = arith.cmpf ogt, %58, %59 : vector<16x16xf32>
    %cst_18 = arith.constant 2.000000e-01 : f32
    %61 = vector.broadcast %cst_18 : f32 to vector<16x16xf32>
    %62 = arith.mulf %61, %58 : vector<16x16xf32>
    %63 = arith.select %60, %58, %62 : vector<16x16xi1>, vector<16x16xf32>
    %64 = arith.addf %63, %4 : vector<16x16xf32>
    %cst_19 = arith.constant dense<0xFF800000> : vector<16xf32>
    %65 = vector.multi_reduction <maximumf>, %64, %cst_19 [1] : vector<16x16xf32> to vector<16xf32>
    %66 = vector.shape_cast %65 : vector<16xf32> to vector<16x1xf32>
    %67 = vector.broadcast %66 : vector<16x1xf32> to vector<16x16xf32>
    %68 = arith.subf %64, %67 : vector<16x16xf32>
    %69 = math.exp %68 : vector<16x16xf32>
    %cst_20 = arith.constant dense<0.000000e+00> : vector<16xf32>
    %70 = vector.multi_reduction <add>, %69, %cst_20 [1] : vector<16x16xf32> to vector<16xf32>
    %71 = vector.shape_cast %70 : vector<16xf32> to vector<16x1xf32>
    %72 = vector.extract_strided_slice %6 {offsets = [0, 16], sizes = [16, 8], strides = [1, 1]} : vector<16x32xf32> to vector<16x8xf32>
    %cst_21 = arith.constant dense<0.000000e+00> : vector<16x8xf32>
    %73 = tpu.matmul %69, %72, %cst_21 {dimension_numbers = #tpu.dot_dimension_numbers<[1], [0], [0], [1], [0, 0, 1, 1], [], []>} : vector<16x16xf32>, vector<16x8xf32>, vector<16x8xf32> -> vector<16x8xf32>
    %74 = tpu.reciprocal %71 {approx = true} : vector<16x1xf32> -> vector<16x1xf32>
    %75 = vector.broadcast %74 : vector<16x1xf32> to vector<16x8xf32>
    %76 = arith.mulf %73, %75 : vector<16x8xf32>
    %77 = vector.extract_strided_slice %7 {offsets = [0, 3], sizes = [16, 1], strides = [1, 1]} : vector<16x4xf32> to vector<16x1xf32>
    %78 = vector.extract_strided_slice %2 {offsets = [3, 0], sizes = [1, 16], strides = [1, 1]} : vector<4x16xf32> to vector<1x16xf32>
    %79 = vector.broadcast %77 : vector<16x1xf32> to vector<16x16xf32>
    %80 = vector.broadcast %78 : vector<1x16xf32> to vector<16x16xf32>
    %81 = arith.addf %79, %80 : vector<16x16xf32>
    %cst_22 = arith.constant 0.000000e+00 : f32
    %82 = vector.broadcast %cst_22 : f32 to vector<16x16xf32>
    %83 = arith.cmpf ogt, %81, %82 : vector<16x16xf32>
    %cst_23 = arith.constant 2.000000e-01 : f32
    %84 = vector.broadcast %cst_23 : f32 to vector<16x16xf32>
    %85 = arith.mulf %84, %81 : vector<16x16xf32>
    %86 = arith.select %83, %81, %85 : vector<16x16xi1>, vector<16x16xf32>
    %87 = arith.addf %86, %4 : vector<16x16xf32>
    %cst_24 = arith.constant dense<0xFF800000> : vector<16xf32>
    %88 = vector.multi_reduction <maximumf>, %87, %cst_24 [1] : vector<16x16xf32> to vector<16xf32>
    %89 = vector.shape_cast %88 : vector<16xf32> to vector<16x1xf32>
    %90 = vector.broadcast %89 : vector<16x1xf32> to vector<16x16xf32>
    %91 = arith.subf %87, %90 : vector<16x16xf32>
    %92 = math.exp %91 : vector<16x16xf32>
    %cst_25 = arith.constant dense<0.000000e+00> : vector<16xf32>
    %93 = vector.multi_reduction <add>, %92, %cst_25 [1] : vector<16x16xf32> to vector<16xf32>
    %94 = vector.shape_cast %93 : vector<16xf32> to vector<16x1xf32>
    %95 = vector.extract_strided_slice %6 {offsets = [0, 24], sizes = [16, 8], strides = [1, 1]} : vector<16x32xf32> to vector<16x8xf32>
    %cst_26 = arith.constant dense<0.000000e+00> : vector<16x8xf32>
    %96 = tpu.matmul %92, %95, %cst_26 {dimension_numbers = #tpu.dot_dimension_numbers<[1], [0], [0], [1], [0, 0, 1, 1], [], []>} : vector<16x16xf32>, vector<16x8xf32>, vector<16x8xf32> -> vector<16x8xf32>
    %97 = tpu.reciprocal %94 {approx = true} : vector<16x1xf32> -> vector<16x1xf32>
    %98 = vector.broadcast %97 : vector<16x1xf32> to vector<16x8xf32>
    %99 = arith.mulf %96, %98 : vector<16x8xf32>
    %100 = tpu.concatenate %30, %53, %76, %99 in 1 : vector<16x8xf32>, vector<16x8xf32>, vector<16x8xf32>, vector<16x8xf32> -> vector<16x32xf32>
    %c0_27 = arith.constant 0 : index
    %c0_28 = arith.constant 0 : index
    %101 = vector.load %arg5[%c0_27, %c0_28] : memref<16x32xf32, #tpu.memory_space<vmem>>, vector<16x32xf32>
    tpu.vector_store %arg5[%c0_27, %c0_28], %100 {strides = array<i32>} : memref<16x32xf32, #tpu.memory_space<vmem>>, vector<16x32xf32>,
    return
  }
  func.func @transform_0(%arg0: i32) -> (i32, i32) {
    %c0_i32 = arith.constant 0 : i32
    %c0_i32_0 = arith.constant 0 : i32
    %c0_i32_1 = arith.constant 0 : i32
    return %c0_i32, %c0_i32_0 : i32, i32
  }
  func.func @transform_1(%arg0: i32) -> (i32, i32) {
    %c0_i32 = arith.constant 0 : i32
    %c0_i32_0 = arith.constant 0 : i32
    %c0_i32_1 = arith.constant 0 : i32
    return %c0_i32, %c0_i32_0 : i32, i32
  }
  func.func @transform_2(%arg0: i32) -> (i32, i32) {
    %c0_i32 = arith.constant 0 : i32
    %c0_i32_0 = arith.constant 0 : i32
    %c0_i32_1 = arith.constant 0 : i32
    return %c0_i32, %c0_i32_0 : i32, i32
  }
  func.func @transform_3(%arg0: i32) -> (i32, i32) {
    %c0_i32 = arith.constant 0 : i32
    %c0_i32_0 = arith.constant 0 : i32
    %c0_i32_1 = arith.constant 0 : i32
    return %c0_i32, %c0_i32_0 : i32, i32
  }
  func.func @transform_4(%arg0: i32) -> (i32, i32) {
    %c0_i32 = arith.constant 0 : i32
    %c0_i32_0 = arith.constant 0 : i32
    %c0_i32_1 = arith.constant 0 : i32
    return %c0_i32, %c0_i32_0 : i32, i32
  }
}

</mosaic_0001>

<llo_original>
// kernel: tpu_custom_call.1
$region0: #{tpu_custom_call.1}
  #allocation0 [shape = 'u32[]', space=smem, size = 0x4, offset = 0x4, fixed_abs, tag = 'smem constant byte address 0x4 - core index']
  #allocation1 [shape = 'u32[72,128]{1,0:T(1,128)}', space=vmem, size = 0x9000, scoped, tag = 'internal scratch']
  %s0 = inlined_call_operand.vmem [shape: f32[16,8], index: 0, kind: input, shape index: {}]
  %s1 = inlined_call_operand.vmem [shape: f32[8,36], index: 1, kind: input, shape index: {}]
  %s2 = inlined_call_operand.vmem [shape: f32[4,16], index: 2, kind: input, shape index: {}]
  %s3 = inlined_call_operand.vmem [shape: bf16[16,16], index: 3, kind: input, shape index: {}]
  %s4 = inlined_call_operand.hbm [shape: f32[16,32], index: 4, kind: output, shape index: {}]
  %s5 = sld [smem:[#allocation0]]
  $region26: #{tpu_custom_call.1} parent=0
    _
  %s7 = ssub.s32 1, %s5
  %s8 = scalar_select 0, %s7, %s5
  $region1: #{tpu_custom_call.1} parent=0
    #allocation2 [shape = 'u8[8192]{0}', space=vmem, size = 0x2000, scoped, tag = 'output window, operand 0, single buffered']
    #allocation3 [shape = 's32[1]{0}', space=sflag, size = 0x4, scoped, tag = 'scoped memory for tpu_custom_call.1']
    %9 = vsyncpa [#allocation3], 0
    // Predicated region
    $region2: #{tpu_custom_call.1} parent=1 // pred_check
      _
    $region3: #{tpu_custom_call.1} parent=1 // pred_check_branch
      %11 = sbr.rel (0) target = $region5
    $region4: #{tpu_custom_call.1} parent=1 // pred_region
      _
    $region5: #{tpu_custom_call.1} parent=1 // pred_fallthru
      _
    // Predicated region
    $region6: #{tpu_custom_call.1} parent=1 // pred_check
      _
    $region7: #{tpu_custom_call.1} parent=1 // pred_check_branch
      %13 = sbr.rel (0) target = $region9
    $region8: #{tpu_custom_call.1} parent=1 // pred_region
      _
    $region9: #{tpu_custom_call.1} parent=1 // pred_fallthru
      _
    // Predicated region
    $region10: #{tpu_custom_call.1} parent=1 // pred_check
      _
    $region11: #{tpu_custom_call.1} parent=1 // pred_check_branch
      %15 = sbr.rel (0) target = $region13
    $region12: #{tpu_custom_call.1} parent=1 // pred_region
      _
    $region13: #{tpu_custom_call.1} parent=1 // pred_fallthru
      _
    // Predicated region
    $region14: #{tpu_custom_call.1} parent=1 // pred_check
      _
    $region15: #{tpu_custom_call.1} parent=1 // pred_check_branch
      %17 = sbr.rel (0) target = $region17
    $region16: #{tpu_custom_call.1} parent=1 // pred_region
      _
    $region17: #{tpu_custom_call.1} parent=1 // pred_fallthru
      _
    %v18 = vld [vmem:[%s0] sm:$0xff]
    %v19 = vld [vmem:[%s0 + $0x8] sm:$0xff]
    %v20 = vld [vmem:[%s1] sm:$0xff]
    %v21 = vld [vmem:[%s2] sm:$0xf]
    %v22 = vld [vmem:[%s3] sm:$0xf]
    %v23 = vld [vmem:[%s3 + $0x4] sm:$0xf]
    %v24 = vunpack.c.l.bf16 %v22
    %v25 = vunpack.c.l.bf16 %v23
    %vm26 = vcmask 64512
    %v28 = vsel %vm26, %v18, 0
    %v31 = vsel %vm26, %v19, 0
    %33 = vmatpush.msra.mxu0 0.0
    %34 = vmatpush.msra.mxu0 0.0
    %35 = vmatpush.msra.mxu0 0.0
    %36 = vmatpush.msra.mxu0 0.0
    %37 = vmatpush.msra.mxu0 0.0
    %38 = vmatpush.msra.mxu0 0.0
    %39 = vmatpush.msra.mxu0 0.0
    %40 = vmatpush.msra.mxu0 0.0
    %41 = vmatpush.msra.mxu0 0.0
    %42 = vmatpush.msra.mxu0 0.0
    %43 = vmatpush.msra.mxu0 0.0
    %44 = vmatpush.msra.mxu0 0.0
    %45 = vmatpush.msra.mxu0 0.0
    %46 = vmatpush.msra.mxu0 0.0
    %47 = vmatpush.msra.mxu0 0.0
    %48 = vmatpush.msra.mxu0 %v20
    %49 = vmatmul.f32.gmra.mxu0 %v28
    %v50 = vpop.f32.mrf.mxu0
    %v51 = vadd.f32 0.0, %v50
    %52 = vmatmul.f32.gmra.mxu0 %v31
    %v53 = vpop.f32.mrf.mxu0
    %v54 = vadd.f32 0.0, %v53
    %55 = vdwg.mxu0
    %57 = vset.pattern.permute.xlu0 32
    %58 = vperm.xlu0 %57, %v51
    %v59 = vpop.permute.xlu0 %58
    %62 = vset.pattern.permute.xlu0 32
    %63 = vperm.xlu0 %62, %v54
    %v64 = vpop.permute.xlu0 %63
    %v66 = vperm.slane %v21, 0
    %v67 = vadd.f32 %v59, %v66
    %v68 = vadd.f32 %v64, %v66
    %vm69 = vcmp.gt.f32.partialorder %v67, 0.0
    %vm70 = vcmp.gt.f32.partialorder %v68, 0.0
    %v71 = vmul.f32 %v67, 0.2
    %v72 = vmul.f32 %v68, 0.2
    %v73 = vsel %vm69, %v67, %v71
    %v74 = vsel %vm70, %v68, %v72
    %v75 = vadd.f32 %v73, %v24
    %v76 = vadd.f32 %v74, %v25
    %vm77 = vcmask 130048
    %v78 = vsel %vm77, %v75, -inf
    %79 = vmax.xlane.f32.xlu0 %v78
    %v80 = vpop.xlane.xlu0 %79
    %v81 = vsel %vm77, %v76, -inf
    %82 = vmax.xlane.f32.xlu0 %v81
    %v83 = vpop.xlane.xlu0 %82
    %v84 = vsub.f32 %v75, %v80
    %v85 = vsub.f32 %v76, %v83
    %v86 = vmul.f32 %v84, 1.442695
    %v87 = vpow.pop %v86
    %v88 = vmul.f32 %v85, 1.442695
    %v89 = vpow.pop %v88
    %v90 = vsel %vm77, %v87, 0.0
    %91 = vadd.xlane.f32.xlu0 %v90
    %v92 = vpop.xlane.xlu0 %91
    %v93 = vsel %vm77, %v89, 0.0
    %94 = vadd.xlane.f32.xlu0 %v93
    %v95 = vpop.xlane.xlu0 %94
    %v97 = vsel %vm77, %v87, 0
    %v100 = vsel %vm77, %v89, 0
    %102 = vmatpush.msra.mxu0 0.0
    %103 = vmatpush.msra.mxu0 0.0
    %104 = vmatpush.msra.mxu0 0.0
    %105 = vmatpush.msra.mxu0 0.0
    %106 = vmatpush.msra.mxu0 0.0
    %107 = vmatpush.msra.mxu0 0.0
    %108 = vmatpush.msra.mxu0 0.0
    %109 = vmatpush.msra.mxu0 0.0
    %110 = vmatpush.msra.mxu0 0.0
    %111 = vmatpush.msra.mxu0 0.0
    %112 = vmatpush.msra.mxu0 0.0
    %113 = vmatpush.msra.mxu0 0.0
    %114 = vmatpush.msra.mxu0 0.0
    %115 = vmatpush.msra.mxu0 0.0
    %116 = vmatpush.msra.mxu0 %v54
    %117 = vmatpush.msra.mxu0 %v51
    %118 = vmatmul.f32.gmra.mxu0 %v97
    %v119 = vpop.f32.mrf.mxu0
    %v120 = vadd.f32 0.0, %v119
    %121 = vmatmul.f32.gmra.mxu0 %v100
    %v122 = vpop.f32.mrf.mxu0
    %v123 = vadd.f32 0.0, %v122
    %124 = vdwg.mxu0
    %v125 = vrcp.pop %v92
    %v126 = vrcp.pop %v95
    %v127 = vmul.f32 %v120, %v125
    %v128 = vmul.f32 %v123, %v126
    %129 = vset.pattern.permute.xlu0 33
    %130 = vperm.xlu0 %129, %v51
    %v131 = vpop.permute.xlu0 %130
    %133 = vset.pattern.permute.xlu0 33
    %134 = vperm.xlu0 %133, %v54
    %v135 = vpop.permute.xlu0 %134
    %v137 = vperm.slane %v21, 1
    %v138 = vadd.f32 %v131, %v137
    %v139 = vadd.f32 %v135, %v137
    %vm140 = vcmp.gt.f32.partialorder %v138, 0.0
    %vm141 = vcmp.gt.f32.partialorder %v139, 0.0
    %v142 = vmul.f32 %v138, 0.2
    %v143 = vmul.f32 %v139, 0.2
    %v144 = vsel %vm140, %v138, %v142
    %v145 = vsel %vm141, %v139, %v143
    %v146 = vadd.f32 %v144, %v24
    %v147 = vadd.f32 %v145, %v25
    %v148 = vsel %vm77, %v146, -inf
    %149 = vmax.xlane.f32.xlu0 %v148
    %v150 = vpop.xlane.xlu0 %149
    %v151 = vsel %vm77, %v147, -inf
    %152 = vmax.xlane.f32.xlu0 %v151
    %v153 = vpop.xlane.xlu0 %152
    %v154 = vsub.f32 %v146, %v150
    %v155 = vsub.f32 %v147, %v153
    %v156 = vmul.f32 %v154, 1.442695
    %v157 = vpow.pop %v156
    %v158 = vmul.f32 %v155, 1.442695
    %v159 = vpow.pop %v158
    %v160 = vsel %vm77, %v157, 0.0
    %161 = vadd.xlane.f32.xlu0 %v160
    %v162 = vpop.xlane.xlu0 %161
    %v163 = vsel %vm77, %v159, 0.0
    %164 = vadd.xlane.f32.xlu0 %v163
    %v165 = vpop.xlane.xlu0 %164
    %166 = vrot.lane.b32.xlu0 %v51, 120
    %v167 = vpop.permute.xlu0 %166
    %168 = vrot.lane.b32.xlu0 %v54, 120
    %v169 = vpop.permute.xlu0 %168
    %v173 = vsel %vm77, %v157, 0
    %v176 = vsel %vm77, %v159, 0
    %178 = vmatpush.msra.mxu0 0.0
    %179 = vmatpush.msra.mxu0 0.0
    %180 = vmatpush.msra.mxu0 0.0
    %181 = vmatpush.msra.mxu0 0.0
    %182 = vmatpush.msra.mxu0 0.0
    %183 = vmatpush.msra.mxu0 0.0
    %184 = vmatpush.msra.mxu0 0.0
    %185 = vmatpush.msra.mxu0 0.0
    %186 = vmatpush.msra.mxu0 0.0
    %187 = vmatpush.msra.mxu0 0.0
    %188 = vmatpush.msra.mxu0 0.0
    %189 = vmatpush.msra.mxu0 0.0
    %190 = vmatpush.msra.mxu0 0.0
    %191 = vmatpush.msra.mxu0 0.0
    %192 = vmatpush.msra.mxu0 %v169
    %193 = vmatpush.msra.mxu0 %v167
    %194 = vmatmul.f32.gmra.mxu0 %v173
    %v195 = vpop.f32.mrf.mxu0
    %v196 = vadd.f32 0.0, %v195
    %197 = vmatmul.f32.gmra.mxu0 %v176
    %v198 = vpop.f32.mrf.mxu0
    %v199 = vadd.f32 0.0, %v198
    %200 = vdwg.mxu0
    %v201 = vrcp.pop %v162
    %v202 = vrcp.pop %v165
    %v203 = vmul.f32 %v196, %v201
    %v204 = vmul.f32 %v199, %v202
    %205 = vset.pattern.permute.xlu0 34
    %206 = vperm.xlu0 %205, %v51
    %v207 = vpop.permute.xlu0 %206
    %209 = vset.pattern.permute.xlu0 34
    %210 = vperm.xlu0 %209, %v54
    %v211 = vpop.permute.xlu0 %210
    %v213 = vperm.slane %v21, 2
    %v214 = vadd.f32 %v207, %v213
    %v215 = vadd.f32 %v211, %v213
    %vm216 = vcmp.gt.f32.partialorder %v214, 0.0
    %vm217 = vcmp.gt.f32.partialorder %v215, 0.0
    %v218 = vmul.f32 %v214, 0.2
    %v219 = vmul.f32 %v215, 0.2
    %v220 = vsel %vm216, %v214, %v218
    %v221 = vsel %vm217, %v215, %v219
    %v222 = vadd.f32 %v220, %v24
    %v223 = vadd.f32 %v221, %v25
    %v224 = vsel %vm77, %v222, -inf
    %225 = vmax.xlane.f32.xlu0 %v224
    %v226 = vpop.xlane.xlu0 %225
    %v227 = vsel %vm77, %v223, -inf
    %228 = vmax.xlane.f32.xlu0 %v227
    %v229 = vpop.xlane.xlu0 %228
    %v230 = vsub.f32 %v222, %v226
    %v231 = vsub.f32 %v223, %v229
    %v232 = vmul.f32 %v230, 1.442695
    %v233 = vpow.pop %v232
    %v234 = vmul.f32 %v231, 1.442695
    %v235 = vpow.pop %v234
    %v236 = vsel %vm77, %v233, 0.0
    %237 = vadd.xlane.f32.xlu0 %v236
    %v238 = vpop.xlane.xlu0 %237
    %v239 = vsel %vm77, %v235, 0.0
    %240 = vadd.xlane.f32.xlu0 %v239
    %v241 = vpop.xlane.xlu0 %240
    %242 = vrot.lane.b32.xlu0 %v51, 112
    %v243 = vpop.permute.xlu0 %242
    %244 = vrot.lane.b32.xlu0 %v54, 112
    %v245 = vpop.permute.xlu0 %244
    %v249 = vsel %vm77, %v233, 0
    %v252 = vsel %vm77, %v235, 0
    %254 = vmatpush.msra.mxu0 0.0
    %255 = vmatpush.msra.mxu0 0.0
    %256 = vmatpush.msra.mxu0 0.0
    %257 = vmatpush.msra.mxu0 0.0
    %258 = vmatpush.msra.mxu0 0.0
    %259 = vmatpush.msra.mxu0 0.0
    %260 = vmatpush.msra.mxu0 0.0
    %261 = vmatpush.msra.mxu0 0.0
    %262 = vmatpush.msra.mxu0 0.0
    %263 = vmatpush.msra.mxu0 0.0
    %264 = vmatpush.msra.mxu0 0.0
    %265 = vmatpush.msra.mxu0 0.0
    %266 = vmatpush.msra.mxu0 0.0
    %267 = vmatpush.msra.mxu0 0.0
    %268 = vmatpush.msra.mxu0 %v245
    %269 = vmatpush.msra.mxu0 %v243
    %270 = vmatmul.f32.gmra.mxu0 %v249
    %v271 = vpop.f32.mrf.mxu0
    %v272 = vadd.f32 0.0, %v271
    %273 = vmatmul.f32.gmra.mxu0 %v252
    %v274 = vpop.f32.mrf.mxu0
    %v275 = vadd.f32 0.0, %v274
    %276 = vdwg.mxu0
    %v277 = vrcp.pop %v238
    %v278 = vrcp.pop %v241
    %v279 = vmul.f32 %v272, %v277
    %v280 = vmul.f32 %v275, %v278
    %281 = vset.pattern.permute.xlu0 35
    %282 = vperm.xlu0 %281, %v51
    %v283 = vpop.permute.xlu0 %282
    %285 = vset.pattern.permute.xlu0 35
    %286 = vperm.xlu0 %285, %v54
    %v287 = vpop.permute.xlu0 %286
    %v289 = vperm.slane %v21, 3
    %v290 = vadd.f32 %v283, %v289
    %v291 = vadd.f32 %v287, %v289
    %vm292 = vcmp.gt.f32.partialorder %v290, 0.0
    %vm293 = vcmp.gt.f32.partialorder %v291, 0.0
    %v294 = vmul.f32 %v290, 0.2
    %v295 = vmul.f32 %v291, 0.2
    %v296 = vsel %vm292, %v290, %v294
    %v297 = vsel %vm293, %v291, %v295
    %v298 = vadd.f32 %v296, %v24
    %v299 = vadd.f32 %v297, %v25
    %v300 = vsel %vm77, %v298, -inf
    %301 = vmax.xlane.f32.xlu0 %v300
    %v302 = vpop.xlane.xlu0 %301
    %v303 = vsel %vm77, %v299, -inf
    %304 = vmax.xlane.f32.xlu0 %v303
    %v305 = vpop.xlane.xlu0 %304
    %v306 = vsub.f32 %v298, %v302
    %v307 = vsub.f32 %v299, %v305
    %v308 = vmul.f32 %v306, 1.442695
    %v309 = vpow.pop %v308
    %v310 = vmul.f32 %v307, 1.442695
    %v311 = vpow.pop %v310
    %v312 = vsel %vm77, %v309, 0.0
    %313 = vadd.xlane.f32.xlu0 %v312
    %v314 = vpop.xlane.xlu0 %313
    %v315 = vsel %vm77, %v311, 0.0
    %316 = vadd.xlane.f32.xlu0 %v315
    %v317 = vpop.xlane.xlu0 %316
    %318 = vrot.lane.b32.xlu0 %v51, 104
    %v319 = vpop.permute.xlu0 %318
    %320 = vrot.lane.b32.xlu0 %v54, 104
    %v321 = vpop.permute.xlu0 %320
    %v325 = vsel %vm77, %v309, 0
    %v328 = vsel %vm77, %v311, 0
    %330 = vmatpush.msra.mxu0 0.0
    %331 = vmatpush.msra.mxu0 0.0
    %332 = vmatpush.msra.mxu0 0.0
    %333 = vmatpush.msra.mxu0 0.0
    %334 = vmatpush.msra.mxu0 0.0
    %335 = vmatpush.msra.mxu0 0.0
    %336 = vmatpush.msra.mxu0 0.0
    %337 = vmatpush.msra.mxu0 0.0
    %338 = vmatpush.msra.mxu0 0.0
    %339 = vmatpush.msra.mxu0 0.0
    %340 = vmatpush.msra.mxu0 0.0
    %341 = vmatpush.msra.mxu0 0.0
    %342 = vmatpush.msra.mxu0 0.0
    %343 = vmatpush.msra.mxu0 0.0
    %344 = vmatpush.msra.mxu0 %v321
    %345 = vmatpush.msra.mxu0 %v319
    %346 = vmatmul.f32.gmra.mxu0 %v325
    %v347 = vpop.f32.mrf.mxu0
    %v348 = vadd.f32 0.0, %v347
    %349 = vmatmul.f32.gmra.mxu0 %v328
    %v350 = vpop.f32.mrf.mxu0
    %v351 = vadd.f32 0.0, %v350
    %352 = vdwg.mxu0
    %v353 = vrcp.pop %v314
    %v354 = vrcp.pop %v317
    %v355 = vmul.f32 %v348, %v353
    %v356 = vmul.f32 %v351, %v354
    %359 = vrot.lane.b32.xlu0 %v203, 8
    %v360 = vpop.permute.xlu0 %359
    %361 = vrot.lane.b32.xlu0 %v204, 8
    %v362 = vpop.permute.xlu0 %361
    %367 = vrot.lane.b32.xlu0 %v279, 16
    %v368 = vpop.permute.xlu0 %367
    %369 = vrot.lane.b32.xlu0 %v280, 16
    %v370 = vpop.permute.xlu0 %369
    %375 = vrot.lane.b32.xlu0 %v355, 24
    %v376 = vpop.permute.xlu0 %375
    %377 = vrot.lane.b32.xlu0 %v356, 24
    %v378 = vpop.permute.xlu0 %377
    %v381 = vsel %vm26, %v127, %v360
    %v382 = vsel %vm26, %v128, %v362
    %v383 = vsel %vm77, %v381, %v368
    %v384 = vsel %vm77, %v382, %v370
    %vm385 = vcmask 195584
    %v386 = vsel %vm385, %v383, %v376
    %v387 = vsel %vm385, %v384, %v378
    %vm388 = vcmask 261120
    %389 = vst.msk [vmem:[#allocation2] sm:$0xff] %vm388, %v386
    %390 = vst.msk [vmem:[#allocation2 + $0x8] sm:$0xff] %vm388, %v387
    // Predicated region
    $region18: #{tpu_custom_call.1} parent=1 // pred_check
      _
    $region19: #{tpu_custom_call.1} parent=1 // pred_check_branch
      %392 = sbr.rel (0) target = $region21
    $region20: #{tpu_custom_call.1} parent=1 // pred_region
      %394 = vsyncadd [#allocation3], 0
      %s395 = sshll.u32 [#allocation2], 4
      %s396 = int_to_ptr.vmem [resolvable:$true] %s395
      %s397 = sshll.u32 %s4, 4
      %s398 = int_to_ptr.hbm [resolvable:$true] %s397
      %403 = dma.vmem_to_hbm [thread:$0]  %s396, 256, %s398, [#allocation3], 128, 128, 8
    $region21: #{tpu_custom_call.1} parent=1 // pred_fallthru
      _
    // Predicated region
    $region22: #{tpu_custom_call.1} parent=1 // pred_check
      _
    $region23: #{tpu_custom_call.1} parent=1 // pred_check_branch
      %405 = sbr.rel (0) target = $region25
    $region24: #{tpu_custom_call.1} parent=1 // pred_region
      %407 = dma.done [#allocation3], 256
    $region25: #{tpu_custom_call.1} parent=1 // pred_fallthru
      _
    %408 = vsyncpa [#allocation3], 1

</llo_original>
